<compile_context>
chip_gen: v6e
topology: v6e:2x2x1
jax: 0.10.0
libtpu: 0.0.40
codegen_flags: <defaults>
</compile_context>

<pallas_src>
import functools

import jax
import jax.numpy as jnp
from jax.experimental import pallas as pl
from jax.experimental.pallas import tpu as pltpu

IN_DIM = 512
HID_DIM = 256
OUT_DIM = 256

# Batch-tile candidates (descending). >=512 rows amortize the ~0.35 us/step
# grid overhead toward the HBM roofline; 2048 is safe on all generations once
# the scoped-VMEM limit is raised (working set ~20 MiB at tile_b=2048).
_TILE_CANDIDATES = (2048, 1024, 512, 256, 128, 64, 32, 16)


def _pick_tile_b(B: int) -> int:
    """Largest candidate tile dividing B that still yields >= 2 grid steps.

    With a single grid step there is no pipelining (input DMA, compute and
    output writeback serialize), so we prefer a half-size tile over one big
    tile whenever B permits it.
    """
    for t in _TILE_CANDIDATES:
        if B % t == 0 and B // t >= 2:
            return t
    return B  # tiny / odd batch: one tile spanning the whole batch dim


def _vmem_limit_bytes(tile_b: int) -> int:
    """Estimated scoped-VMEM need (double-buffered tiles + weights + scratch)."""
    x_bytes = tile_b * IN_DIM * 4 * 2            # f32 x tiles, double-buffered
    o_bytes = tile_b * OUT_DIM * 4 * 2           # f32 out tiles, double-buffered
    w_bytes = (IN_DIM * HID_DIM + HID_DIM * OUT_DIM) * 2 * 2   # bf16 weights x2 bufs
    b_bytes = (HID_DIM + OUT_DIM) * 4 * 2
    scratch = tile_b * (IN_DIM * 2 + HID_DIM * 4 + OUT_DIM * 4)  # bf16 x, f32 h/y
    need = x_bytes + o_bytes + w_bytes + b_bytes + scratch
    # 1.5x headroom, floored at 32 MiB (compiler-internal scratch), capped at
    # 48 MiB (inside v7x's 64 MiB physical VMEM; trivially fine on v5e/v6e).
    return min(max(int(need * 1.5), 32 * 1024 * 1024), 48 * 1024 * 1024)


def autoencoder_kernel(x_ref, w1_ref, b1_ref, w2_ref, b2_ref, o_ref):
    # encoder: Linear(512 -> 256). Cast x to bf16 on the VPU right before the
    # MXU matmul (free under DMA slack); accumulate in f32.
    x_bf = x_ref[...].astype(jnp.bfloat16)
    h = jnp.dot(x_bf, w1_ref[...], preferred_element_type=jnp.float32)
    h = jnp.maximum(h + b1_ref[...], 0.0)                 # bias + ReLU in f32
    # decoder: Linear(256 -> 256); cast activations back to bf16 for the MXU.
    y = jnp.dot(h.astype(jnp.bfloat16), w2_ref[...],
                preferred_element_type=jnp.float32)
    o_ref[...] = (y + b2_ref[...]).astype(o_ref.dtype)


@functools.partial(jax.jit, static_argnames=("tile_b", "out_dtype"))
def autoencoder_forward(x, w1_bf, b1_f, w2_bf, b2_f, *, tile_b=None,
                        out_dtype=jnp.float32):
    """x: (B, 512) any float dtype. Weights pre-cast via prepare_params()."""
    B = x.shape[0]
    if tile_b is None:
        tile_b = _pick_tile_b(B)
    n_tiles = pl.cdiv(B, tile_b)

    x_bytes_per_elem = jnp.dtype(x.dtype).itemsize
    out_bytes_per_elem = jnp.dtype(out_dtype).itemsize
    flops = 2 * B * (IN_DIM * HID_DIM + HID_DIM * OUT_DIM)
    bytes_accessed = (
        B * IN_DIM * x_bytes_per_elem          # x (native dtype, read once)
        + IN_DIM * HID_DIM * 2                 # w1 (bf16)
        + HID_DIM * OUT_DIM * 2                # w2 (bf16)
        + HID_DIM * 4 + OUT_DIM * 4            # biases (f32)
        + B * OUT_DIM * out_bytes_per_elem     # output
    )

    return pl.pallas_call(
        autoencoder_kernel,
        out_shape=jax.ShapeDtypeStruct((B, OUT_DIM), out_dtype),
        grid_spec=pltpu.PrefetchScalarGridSpec(
            num_scalar_prefetch=0,
            grid=(n_tiles,),
            in_specs=[
                # x: tiled over the batch axis -> double-buffered DMA.
                pl.BlockSpec((tile_b, IN_DIM), lambda i: (i, 0)),
                # weights / biases: same block every step -> VMEM-resident.
                pl.BlockSpec((IN_DIM, HID_DIM), lambda i: (0, 0)),
                pl.BlockSpec((1, HID_DIM), lambda i: (0, 0)),
                pl.BlockSpec((HID_DIM, OUT_DIM), lambda i: (0, 0)),
                pl.BlockSpec((1, OUT_DIM), lambda i: (0, 0)),
            ],
            out_specs=pl.BlockSpec((tile_b, OUT_DIM), lambda i: (i, 0)),
        ),
        compiler_params=pltpu.CompilerParams(
            # Batch tiles are independent -> shard across v7x's 2 TCs.
            # (If xprof shows one TC idle on v7x, switch to pltpu.CORE_PARALLEL.)
            dimension_semantics=("parallel",),
            vmem_limit_bytes=_vmem_limit_bytes(tile_b),
        ),
        cost_estimate=pl.CostEstimate(
            flops=flops, transcendentals=0, bytes_accessed=bytes_accessed
        ),
    )(x, w1_bf, b1_f, w2_bf, b2_f)


def init_params(key):
    # Deterministic init matching PyTorch nn.Linear default:
    # U(-1/sqrt(fan_in), 1/sqrt(fan_in)) for both weight and bias.
    # Weights stored as (in_features, out_features) so the kernel does x @ W.
    k1, k2, k3, k4 = jax.random.split(key, 4)
    bound1 = 1.0 / jnp.sqrt(jnp.float32(IN_DIM))
    bound2 = 1.0 / jnp.sqrt(jnp.float32(HID_DIM))
    w1 = jax.random.uniform(k1, (IN_DIM, HID_DIM), jnp.float32, -bound1, bound1)
    b1 = jax.random.uniform(k2, (HID_DIM,), jnp.float32, -bound1, bound1)
    w2 = jax.random.uniform(k3, (HID_DIM, OUT_DIM), jnp.float32, -bound2, bound2)
    b2 = jax.random.uniform(k4, (OUT_DIM,), jnp.float32, -bound2, bound2)
    return w1, b1, w2, b2


def prepare_params(w1, b1, w2, b2):
    """One-time conversion: bf16 weights at rest, f32 biases pre-reshaped."""
    return (w1.astype(jnp.bfloat16),
            b1.astype(jnp.float32).reshape(1, HID_DIM),
            w2.astype(jnp.bfloat16),
            b2.astype(jnp.float32).reshape(1, OUT_DIM))


if __name__ == "__main__":
    key = jax.random.PRNGKey(0)
    k_x, k_p = jax.random.split(key)

    # Small test shape: B=256 -> the tile picker chooses tile_b=128, giving
    # 2 grid steps so the batch-tiled pipeline (double-buffered x/out DMA) is
    # exercised while filling MXU rows reasonably.
    B = 256
    x = jax.random.normal(k_x, (B, IN_DIM), jnp.float32)
    w1, b1, w2, b2 = init_params(k_p)
    params = prepare_params(w1, b1, w2, b2)   # done once, reused every call

    out = autoencoder_forward(x, *params)
    out = jax.block_until_ready(out)

    # Pure-JAX f32 reference; tolerance loosened for bf16 matmul operands.
    ref = jnp.maximum(x @ w1 + b1[None, :], 0.0) @ w2 + b2[None, :]
    assert out.shape == (B, OUT_DIM)
    assert out.dtype == jnp.float32
    assert bool(jnp.all(jnp.isfinite(out)))
    max_err = float(jnp.max(jnp.abs(out - ref)))
    assert jnp.allclose(out, ref, atol=5e-2, rtol=5e-2), max_err

    print("KERNEL_OK")
</pallas_src>

<mosaic_0001>
module attributes {stable_mosaic.version = 11 : i64} {
  func.func @autoencoder_kernel(%arg0: i32, %arg1: memref<128x512xf32, #tpu.memory_space<vmem>>, %arg2: memref<512x256xbf16, #tpu.memory_space<vmem>>, %arg3: memref<1x256xf32, #tpu.memory_space<vmem>>, %arg4: memref<256x256xbf16, #tpu.memory_space<vmem>>, %arg5: memref<1x256xf32, #tpu.memory_space<vmem>>, %arg6: memref<128x256xf32, #tpu.memory_space<vmem>>) attributes {dimension_semantics = [#tpu.dimension_semantics<parallel>], iteration_bounds = array<i64: 2>, scalar_prefetch = 0 : i64, scratch_operands = 0 : i64, tpu.core_type = #tpu.core_type<tc>, window_params = [{transform_indices = @transform_0, window_bounds = array<i64: 128, 512>}, {pipeline_mode = #tpu.pipeline_mode<synchronous>, transform_indices = @transform_1, window_bounds = array<i64: 512, 256>}, {pipeline_mode = #tpu.pipeline_mode<synchronous>, transform_indices = @transform_2, window_bounds = array<i64: 1, 256>}, {pipeline_mode = #tpu.pipeline_mode<synchronous>, transform_indices = @transform_3, window_bounds = array<i64: 256, 256>}, {pipeline_mode = #tpu.pipeline_mode<synchronous>, transform_indices = @transform_4, window_bounds = array<i64: 1, 256>}, {transform_indices = @transform_5, window_bounds = array<i64: 128, 256>}]} {
    %c0 = arith.constant 0 : index
    %c0_0 = arith.constant 0 : index
    %0 = vector.load %arg1[%c0, %c0_0] : memref<128x512xf32, #tpu.memory_space<vmem>>, vector<128x512xf32>
    %1 = arith.truncf %0 : vector<128x512xf32> to vector<128x512xbf16>
    %c0_1 = arith.constant 0 : index
    %c0_2 = arith.constant 0 : index
    %2 = vector.load %arg2[%c0_1, %c0_2] : memref<512x256xbf16, #tpu.memory_space<vmem>>, vector<512x256xbf16>
    %cst = arith.constant dense<0.000000e+00> : vector<128x256xf32>
    %3 = tpu.matmul %1, %2, %cst {dimension_numbers = #tpu.dot_dimension_numbers<[1], [0], [0], [1], [0, 0, 1, 1], [], []>} : vector<128x512xbf16>, vector<512x256xbf16>, vector<128x256xf32> -> vector<128x256xf32>
    %c0_3 = arith.constant 0 : index
    %c0_4 = arith.constant 0 : index
    %4 = vector.load %arg3[%c0_3, %c0_4] : memref<1x256xf32, #tpu.memory_space<vmem>>, vector<1x256xf32>
    %5 = vector.broadcast %4 : vector<1x256xf32> to vector<128x256xf32>
    %6 = arith.addf %3, %5 : vector<128x256xf32>
    %cst_5 = arith.constant 0.000000e+00 : f32
    %7 = vector.broadcast %cst_5 : f32 to vector<128x256xf32>
    %8 = arith.maximumf %6, %7 : vector<128x256xf32>
    %9 = arith.truncf %8 : vector<128x256xf32> to vector<128x256xbf16>
    %c0_6 = arith.constant 0 : index
    %c0_7 = arith.constant 0 : index
    %10 = vector.load %arg4[%c0_6, %c0_7] : memref<256x256xbf16, #tpu.memory_space<vmem>>, vector<256x256xbf16>
    %cst_8 = arith.constant dense<0.000000e+00> : vector<128x256xf32>
    %11 = tpu.matmul %9, %10, %cst_8 {dimension_numbers = #tpu.dot_dimension_numbers<[1], [0], [0], [1], [0, 0, 1, 1], [], []>} : vector<128x256xbf16>, vector<256x256xbf16>, vector<128x256xf32> -> vector<128x256xf32>
    %c0_9 = arith.constant 0 : index
    %c0_10 = arith.constant 0 : index
    %12 = vector.load %arg5[%c0_9, %c0_10] : memref<1x256xf32, #tpu.memory_space<vmem>>, vector<1x256xf32>
    %13 = vector.broadcast %12 : vector<1x256xf32> to vector<128x256xf32>
    %14 = arith.addf %11, %13 : vector<128x256xf32>
    %c0_11 = arith.constant 0 : index
    %c0_12 = arith.constant 0 : index
    %15 = vector.load %arg6[%c0_11, %c0_12] : memref<128x256xf32, #tpu.memory_space<vmem>>, vector<128x256xf32>
    tpu.vector_store %arg6[%c0_11, %c0_12], %14 {strides = array<i32>} : memref<128x256xf32, #tpu.memory_space<vmem>>, vector<128x256xf32>,
    return
  }
  func.func @transform_0(%arg0: i32) -> (i32, i32) {
    %c0_i32 = arith.constant 0 : i32
    %c0_i32_0 = arith.constant 0 : i32
    return %arg0, %c0_i32 : i32, i32
  }
  func.func @transform_1(%arg0: i32) -> (i32, i32) {
    %c0_i32 = arith.constant 0 : i32
    %c0_i32_0 = arith.constant 0 : i32
    %c0_i32_1 = arith.constant 0 : i32
    return %c0_i32, %c0_i32_0 : i32, i32
  }
  func.func @transform_2(%arg0: i32) -> (i32, i32) {
    %c0_i32 = arith.constant 0 : i32
    %c0_i32_0 = arith.constant 0 : i32
    %c0_i32_1 = arith.constant 0 : i32
    return %c0_i32, %c0_i32_0 : i32, i32
  }
  func.func @transform_3(%arg0: i32) -> (i32, i32) {
    %c0_i32 = arith.constant 0 : i32
    %c0_i32_0 = arith.constant 0 : i32
    %c0_i32_1 = arith.constant 0 : i32
    return %c0_i32, %c0_i32_0 : i32, i32
  }
  func.func @transform_4(%arg0: i32) -> (i32, i32) {
    %c0_i32 = arith.constant 0 : i32
    %c0_i32_0 = arith.constant 0 : i32
    %c0_i32_1 = arith.constant 0 : i32
    return %c0_i32, %c0_i32_0 : i32, i32
  }
  func.func @transform_5(%arg0: i32) -> (i32, i32) {
    %c0_i32 = arith.constant 0 : i32
    %c0_i32_0 = arith.constant 0 : i32
    return %arg0, %c0_i32 : i32, i32
  }
}

</mosaic_0001>

<llo_original>
// kernel: autoencoder_forward.1
$region0: #{autoencoder_forward.1}
  #allocation0 [shape = 'u32[]', space=smem, size = 0x4, offset = 0x4, fixed_abs, tag = 'smem constant byte address 0x4 - core index']
  #allocation1 [shape = 'u32[144,128]{1,0:T(1,128)}', space=vmem, size = 0x12000, scoped, tag = 'internal scratch']
  %s0 = inlined_call_operand.hbm [shape: f32[256,512], index: 0, kind: input, shape index: {}]
  %s1 = inlined_call_operand.hbm [shape: bf16[512,256], index: 1, kind: input, shape index: {}]
  %s2 = inlined_call_operand.vmem [shape: f32[1,256], index: 2, kind: input, shape index: {}]
  %s3 = inlined_call_operand.hbm [shape: bf16[256,256], index: 3, kind: input, shape index: {}]
  %s4 = inlined_call_operand.vmem [shape: f32[1,256], index: 4, kind: input, shape index: {}]
  %s5 = inlined_call_operand.hbm [shape: f32[256,256], index: 5, kind: output, shape index: {}]
  %s6 = sld [smem:[#allocation0]]
  $region65: #{autoencoder_forward.1} parent=0
    _
  %s8 = ssub.s32 1, %s6
  %s9 = scalar_select 0, %s8, %s6
  $region1: #{autoencoder_forward.1} parent=0
    #allocation2 [shape = 'u8[524288]{0}', space=vmem, size = 0x80000, scoped, tag = 'input window, operand 0']
    #allocation3 [shape = 's32[2]{0}', space=sflag, size = 0x8, scoped, tag = 'scoped memory for autoencoder_forward.1']
    #allocation4 [shape = 's32[2]{0}', space=sflag, size = 0x8, scoped, tag = 'scoped memory for autoencoder_forward.1']
    #allocation5 [shape = 'u8[262144]{0}', space=vmem, size = 0x40000, scoped, tag = 'input window, operand 1, single buffered']
    #allocation6 [shape = 's32[1]{0}', space=sflag, size = 0x4, scoped, tag = 'scoped memory for autoencoder_forward.1']
    #allocation7 [shape = 'u8[131072]{0}', space=vmem, size = 0x20000, scoped, tag = 'input window, operand 3, single buffered']
    #allocation8 [shape = 'u8[262144]{0}', space=vmem, size = 0x40000, scoped, tag = 'output window, operand 0']
    %10 = vsyncpa [#allocation3], 0
    %s11 = scalar_lea.sflag [#allocation3], 1
    %12 = vsyncpa %s11, 0
    %13 = vsyncpa [#allocation6], 0
    %14 = vsyncpa [#allocation4], 0
    %s15 = scalar_lea.sflag [#allocation4], 1
    %16 = vsyncpa %s15, 0
    loop: start=0, step=1, limit=4
    $region2: #{autoencoder_forward.1} parent=1 // loop_pre_header
      _
    $region3: #{autoencoder_forward.1} parent=1 // loop_header
      %s18 = sphi 0, %s22
      %p19 = scmp.ge.s32.totalorder %s18, 4
      %s28 = sphi 0, %s30
      %s31 = sphi 0, %s28
      %s32 = sphi 0, %s31
      %s48 = sphi 0, %s32
      %s52 = sphi 0, %s52
      %s54 = sphi 0, %s52
      %s55 = sphi 0, %s54
      %s69 = sphi 0, %s55
      %s73 = sphi 0, %s73
      %s75 = sphi 0, %s73
      %s76 = sphi 0, %s75
      %s90 = sphi 0, %s76
      %s94 = sphi 0, %s94
      %s96 = sphi 0, %s94
      %s97 = sphi 0, %s96
      %s111 = sphi 0, %s97
      %s115 = sphi 0, %s115
      %s117 = sphi 0, %s115
      %s118 = sphi 0, %s117
      %s132 = sphi 0, %s118
      %s138 = sphi 0, %s140
      %s141 = sphi 0, %s138
      %s142 = sphi 0, %s141
      %s158 = sphi 0, %s142
    $region4: #{autoencoder_forward.1} parent=1 // loop_header_branch
      %21 = sbr.rel (%p19) target = $region8
    $region5: #{autoencoder_forward.1} parent=1 // loop_body
      %s23 = ssub.s32 %s18, 1
      %s24 = ssub.s32 %s18, 2
      %s25 = sadd.s32 %s18, 1
      %s26 = ssub.s32 %s18, %s25
      %p27 = scmp.eq.s32.totalorder %s26, 0
      %s29 = sadd.s32 %s28, 1
      %s30 = scalar_select %p27, %s28, %s29
      %p33 = pneg %p27
      %p34 = scmp.eq.s32.totalorder %s18, 1
      %p35 = por %p33, %p34
      %p36 = scmp.ne.s32.totalorder %s28, %s31
      %p37 = scmp.eq.s32.totalorder %s18, 0
      %p38 = por %p36, %p37
      %p39 = scmp.ne.s32.totalorder %s28, %s31
      %p40 = scmp.eq.s32.totalorder %s23, 1
      %p41 = por %p39, %p40
      %p42 = scmp.ne.s32.totalorder %s31, %s32
      %p43 = scmp.eq.s32.totalorder %s23, 0
      %p44 = por %p42, %p43
      %p45 = scmp.ne.s32.totalorder %s31, %s32
      %p46 = scmp.eq.s32.totalorder %s24, 1
      %p47 = por %p45, %p46
      %p49 = scmp.ne.s32.totalorder %s32, %s48
      %p50 = scmp.eq.s32.totalorder %s24, 0
      %p51 = por %p49, %p50
      %s53 = sadd.s32 %s52, 1
      %p56 = scmp.eq.s32.totalorder %s18, 1
      %p57 = scmp.ne.s32.totalorder %s52, %s54
      %p58 = scmp.eq.s32.totalorder %s18, 0
      %p59 = por %p57, %p58
      %p60 = scmp.ne.s32.totalorder %s52, %s54
      %p61 = scmp.eq.s32.totalorder %s23, 1
      %p62 = por %p60, %p61
      %p63 = scmp.ne.s32.totalorder %s54, %s55
      %p64 = scmp.eq.s32.totalorder %s23, 0
      %p65 = por %p63, %p64
      %p66 = scmp.ne.s32.totalorder %s54, %s55
      %p67 = scmp.eq.s32.totalorder %s24, 1
      %p68 = por %p66, %p67
      %p70 = scmp.ne.s32.totalorder %s55, %s69
      %p71 = scmp.eq.s32.totalorder %s24, 0
      %p72 = por %p70, %p71
      %s74 = sadd.s32 %s73, 1
      %p77 = scmp.eq.s32.totalorder %s18, 1
      %p78 = scmp.ne.s32.totalorder %s73, %s75
      %p79 = scmp.eq.s32.totalorder %s18, 0
      %p80 = por %p78, %p79
      %p81 = scmp.ne.s32.totalorder %s73, %s75
      %p82 = scmp.eq.s32.totalorder %s23, 1
      %p83 = por %p81, %p82
      %p84 = scmp.ne.s32.totalorder %s75, %s76
      %p85 = scmp.eq.s32.totalorder %s23, 0
      %p86 = por %p84, %p85
      %p87 = scmp.ne.s32.totalorder %s75, %s76
      %p88 = scmp.eq.s32.totalorder %s24, 1
      %p89 = por %p87, %p88
      %p91 = scmp.ne.s32.totalorder %s76, %s90
      %p92 = scmp.eq.s32.totalorder %s24, 0
      %p93 = por %p91, %p92
      %s95 = sadd.s32 %s94, 1
      %p98 = scmp.eq.s32.totalorder %s18, 1
      %p99 = scmp.ne.s32.totalorder %s94, %s96
      %p100 = scmp.eq.s32.totalorder %s18, 0
      %p101 = por %p99, %p100
      %p102 = scmp.ne.s32.totalorder %s94, %s96
      %p103 = scmp.eq.s32.totalorder %s23, 1
      %p104 = por %p102, %p103
      %p105 = scmp.ne.s32.totalorder %s96, %s97
      %p106 = scmp.eq.s32.totalorder %s23, 0
      %p107 = por %p105, %p106
      %p108 = scmp.ne.s32.totalorder %s96, %s97
      %p109 = scmp.eq.s32.totalorder %s24, 1
      %p110 = por %p108, %p109
      %p112 = scmp.ne.s32.totalorder %s97, %s111
      %p113 = scmp.eq.s32.totalorder %s24, 0
      %p114 = por %p112, %p113
      %s116 = sadd.s32 %s115, 1
      %p119 = scmp.eq.s32.totalorder %s18, 1
      %p120 = scmp.ne.s32.totalorder %s115, %s117
      %p121 = scmp.eq.s32.totalorder %s18, 0
      %p122 = por %p120, %p121
      %p123 = scmp.ne.s32.totalorder %s115, %s117
      %p124 = scmp.eq.s32.totalorder %s23, 1
      %p125 = por %p123, %p124
      %p126 = scmp.ne.s32.totalorder %s117, %s118
      %p127 = scmp.eq.s32.totalorder %s23, 0
      %p128 = por %p126, %p127
      %p129 = scmp.ne.s32.totalorder %s117, %s118
      %p130 = scmp.eq.s32.totalorder %s24, 1
      %p131 = por %p129, %p130
      %p133 = scmp.ne.s32.totalorder %s118, %s132
      %p134 = scmp.eq.s32.totalorder %s24, 0
      %p135 = por %p133, %p134
      %s136 = ssub.s32 %s18, %s25
      %p137 = scmp.eq.s32.totalorder %s136, 0
      %s139 = sadd.s32 %s138, 1
      %s140 = scalar_select %p137, %s138, %s139
      %p143 = pneg %p137
      %p144 = scmp.eq.s32.totalorder %s18, 1
      %p145 = por %p143, %p144
      %p146 = scmp.ne.s32.totalorder %s138, %s141
      %p147 = scmp.eq.s32.totalorder %s18, 0
      %p148 = por %p146, %p147
      %p149 = scmp.ne.s32.totalorder %s138, %s141
      %p150 = scmp.eq.s32.totalorder %s23, 1
      %p151 = por %p149, %p150
      %p152 = scmp.ne.s32.totalorder %s141, %s142
      %p153 = scmp.eq.s32.totalorder %s23, 0
      %p154 = por %p152, %p153
      %p155 = scmp.ne.s32.totalorder %s141, %s142
      %p156 = scmp.eq.s32.totalorder %s24, 1
      %p157 = por %p155, %p156
      %p159 = scmp.ne.s32.totalorder %s142, %s158
      %p160 = scmp.eq.s32.totalorder %s24, 0
      %p161 = por %p159, %p160
      %p162 = scmp.le.s32.totalorder 1, %s18
      %p163 = scmp.lt.s32.totalorder %s18, 3
      %p164 = pnand %p162, %p163
      %p165 = pneg %p164
      // Predicated region
      $region9: #{autoencoder_forward.1} parent=5 // pred_check
        _
      $region10: #{autoencoder_forward.1} parent=5 // pred_check_branch
        %167 = sbr.rel (%p164) target = $region12
      $region11: #{autoencoder_forward.1} parent=5 // pred_region
        %s168 = ssub.s32 %s18, 1
        // Predicated region
        $region13: #{autoencoder_forward.1} parent=11 // pred_check
          %p169 = pneg %p65
        $region14: #{autoencoder_forward.1} parent=11 // pred_check_branch
          %171 = sbr.rel (%p169) target = $region16
        $region15: #{autoencoder_forward.1} parent=11 // pred_region
          %s173 = ssub.s32 8192, 8192
          %174 = vsyncadd [#allocation6], %s173
          %s175 = sshll.u32 [#allocation5], 4
          %s176 = int_to_ptr.vmem [resolvable:$true] %s175
          %181 = dma.hbm_to_vmem [thread:$0]  %s1, 8192, %s176, [#allocation6], 128, 128, 8
        $region16: #{autoencoder_forward.1} parent=11 // pred_fallthru
          _
        // Predicated region
        $region17: #{autoencoder_forward.1} parent=11 // pred_check
          %p182 = pneg %p86
        $region18: #{autoencoder_forward.1} parent=11 // pred_check_branch
          %184 = sbr.rel (%p182) target = $region20
        $region19: #{autoencoder_forward.1} parent=11 // pred_region
          _
        $region20: #{autoencoder_forward.1} parent=11 // pred_fallthru
          _
        // Predicated region
        $region21: #{autoencoder_forward.1} parent=11 // pred_check
          %p185 = pneg %p107
        $region22: #{autoencoder_forward.1} parent=11 // pred_check_branch
          %187 = sbr.rel (%p185) target = $region24
        $region23: #{autoencoder_forward.1} parent=11 // pred_region
          %s189 = ssub.s32 4096, 4096
          %190 = vsyncadd [#allocation6], %s189
          %s191 = sshll.u32 [#allocation7], 4
          %s192 = int_to_ptr.vmem [resolvable:$true] %s191
          %197 = dma.hbm_to_vmem [thread:$0]  %s3, 4096, %s192, [#allocation6], 128, 128, 8
        $region24: #{autoencoder_forward.1} parent=11 // pred_fallthru
          _
        // Predicated region
        $region25: #{autoencoder_forward.1} parent=11 // pred_check
          %p198 = pneg %p128
        $region26: #{autoencoder_forward.1} parent=11 // pred_check_branch
          %200 = sbr.rel (%p198) target = $region28
        $region27: #{autoencoder_forward.1} parent=11 // pred_region
          _
        $region28: #{autoencoder_forward.1} parent=11 // pred_fallthru
          _
      $region12: #{autoencoder_forward.1} parent=5 // pred_fallthru
        _
      %p201 = scmp.lt.s32.totalorder %s18, 2
      // Predicated region
      $region29: #{autoencoder_forward.1} parent=5 // pred_check
        %p202 = pneg %p201
      $region30: #{autoencoder_forward.1} parent=5 // pred_check_branch
        %204 = sbr.rel (%p202) target = $region32
      $region31: #{autoencoder_forward.1} parent=5 // pred_region
        // Predicated region
        $region33: #{autoencoder_forward.1} parent=31 // pred_check
          %p205 = pneg %p38
        $region34: #{autoencoder_forward.1} parent=31 // pred_check_branch
          %207 = sbr.rel (%p205) target = $region36
        $region35: #{autoencoder_forward.1} parent=31 // pred_region
          %s208 = sand.u32 %s28, 1
          %s209 = scalar_lea.sflag [#allocation3], %s208
          %s210 = sand.u32 %s28, 1
          %s211 = smul.addr %s210, 512
          %s212 = scalar_lea.vmem [#allocation2], %s211
          %s213 = smul.u32 16, %s18
          %s215 = ssub.s32 8192, 8192
          %216 = vsyncadd %s209, %s215
          %s217 = smul.addr %s213, 4
          %s218 = smul.addr %s217, 128
          %s219 = scalar_lea.hbm %s0, %s218
          %s220 = sshll.u32 %s212, 4
          %s221 = int_to_ptr.vmem [resolvable:$true] %s220
          %226 = dma.hbm_to_vmem [thread:$0]  %s219, 8192, %s221, %s209, 512, 512, 32
        $region36: #{autoencoder_forward.1} parent=31 // pred_fallthru
          _
      $region32: #{autoencoder_forward.1} parent=5 // pred_fallthru
        _
      %p227 = scmp.le.s32.totalorder 1, %s18
      %p228 = scmp.lt.s32.totalorder %s18, 3
      %p229 = pnand %p227, %p228
      %p230 = pneg %p229
      // Predicated region
      $region37: #{autoencoder_forward.1} parent=5 // pred_check
        _
      $region38: #{autoencoder_forward.1} parent=5 // pred_check_branch
        %232 = sbr.rel (%p229) target = $region40
      $region39: #{autoencoder_forward.1} parent=5 // pred_region
        %s233 = ssub.s32 %s18, 1
        %s234 = sand.u32 %s31, 1
        %s235 = scalar_lea.sflag [#allocation3], %s234
        %s236 = sand.u32 %s31, 1
        %s237 = smul.addr %s236, 512
        %s238 = scalar_lea.vmem [#allocation2], %s237
        // Predicated region
        $region41: #{autoencoder_forward.1} parent=39 // pred_check
          %p239 = pneg %p44
        $region42: #{autoencoder_forward.1} parent=39 // pred_check_branch
          %241 = sbr.rel (%p239) target = $region44
        $region43: #{autoencoder_forward.1} parent=39 // pred_region
          %242 = dma.done %s235, 8192
        $region44: #{autoencoder_forward.1} parent=39 // pred_fallthru
          _
        // Predicated region
        $region45: #{autoencoder_forward.1} parent=39 // pred_check
          %p243 = pneg %p65
        $region46: #{autoencoder_forward.1} parent=39 // pred_check_branch
          %245 = sbr.rel (%p243) target = $region48
        $region47: #{autoencoder_forward.1} parent=39 // pred_region
          %246 = dma.done [#allocation6], 8192
        $region48: #{autoencoder_forward.1} parent=39 // pred_fallthru
          _
        // Predicated region
        $region49: #{autoencoder_forward.1} parent=39 // pred_check
          %p247 = pneg %p107
        $region50: #{autoencoder_forward.1} parent=39 // pred_check_branch
          %249 = sbr.rel (%p247) target = $region52
        $region51: #{autoencoder_forward.1} parent=39 // pred_region
          %250 = dma.done [#allocation6], 4096
        $region52: #{autoencoder_forward.1} parent=39 // pred_fallthru
          _
        %s251 = sand.u32 %s31, 1
        %s252 = scalar_lea.sflag [#allocation3], %s251
        %s253 = sand.u32 %s31, 1
        %s254 = smul.addr %s253, 512
        %s255 = scalar_lea.vmem [#allocation2], %s254
        %p256 = pneg %p44
        %p257 = pneg %p41
        %p258 = pneg %p65
        %p259 = pneg %p62
        %p260 = pneg %p86
        %p261 = pneg %p83
        %p262 = pneg %p107
        %p263 = pneg %p104
        %p264 = pneg %p128
        %p265 = pneg %p125
        %p266 = pneg %p154
        %p267 = pneg %p151
        %s268 = sand.u32 %s141, 1
        %s269 = scalar_lea.sflag [#allocation4], %s268
        %s270 = sand.u32 %s141, 1
        %s271 = smul.addr %s270, 256
        %s272 = scalar_lea.vmem [#allocation8], %s271
        %s273 = smul.u32 16, %s23
        %s274 = smul.u32 16, %s23
        %v275 = vld [vmem:[%s238] sm:$0xff]
        %v276 = vld [vmem:[%s238 + $0x8] sm:$0xff]
        %v277 = vld [vmem:[%s238 + $0x10] sm:$0xff]
        %v278 = vld [vmem:[%s238 + $0x18] sm:$0xff]
        %v279 = vld [vmem:[%s238 + $0x20] sm:$0xff]
        %v280 = vld [vmem:[%s238 + $0x28] sm:$0xff]
        %v281 = vld [vmem:[%s238 + $0x30] sm:$0xff]
        %v282 = vld [vmem:[%s238 + $0x38] sm:$0xff]
        %v283 = vld [vmem:[%s238 + $0x40] sm:$0xff]
        %v284 = vld [vmem:[%s238 + $0x48] sm:$0xff]
        %v285 = vld [vmem:[%s238 + $0x50] sm:$0xff]
        %v286 = vld [vmem:[%s238 + $0x58] sm:$0xff]
        %v287 = vld [vmem:[%s238 + $0x60] sm:$0xff]
        %v288 = vld [vmem:[%s238 + $0x68] sm:$0xff]
        %v289 = vld [vmem:[%s238 + $0x70] sm:$0xff]
        %v290 = vld [vmem:[%s238 + $0x78] sm:$0xff]
        %v291 = vld [vmem:[%s238 + $0x80] sm:$0xff]
        %v292 = vld [vmem:[%s238 + $0x88] sm:$0xff]
        %v293 = vld [vmem:[%s238 + $0x90] sm:$0xff]
        %v294 = vld [vmem:[%s238 + $0x98] sm:$0xff]
        %v295 = vld [vmem:[%s238 + $0xa0] sm:$0xff]
        %v296 = vld [vmem:[%s238 + $0xa8] sm:$0xff]
        %v297 = vld [vmem:[%s238 + $0xb0] sm:$0xff]
        %v298 = vld [vmem:[%s238 + $0xb8] sm:$0xff]
        %v299 = vld [vmem:[%s238 + $0xc0] sm:$0xff]
        %v300 = vld [vmem:[%s238 + $0xc8] sm:$0xff]
        %v301 = vld [vmem:[%s238 + $0xd0] sm:$0xff]
        %v302 = vld [vmem:[%s238 + $0xd8] sm:$0xff]
        %v303 = vld [vmem:[%s238 + $0xe0] sm:$0xff]
        %v304 = vld [vmem:[%s238 + $0xe8] sm:$0xff]
        %v305 = vld [vmem:[%s238 + $0xf0] sm:$0xff]
        %v306 = vld [vmem:[%s238 + $0xf8] sm:$0xff]
        %v307 = vld [vmem:[%s238 + $0x100] sm:$0xff]
        %v308 = vld [vmem:[%s238 + $0x108] sm:$0xff]
        %v309 = vld [vmem:[%s238 + $0x110] sm:$0xff]
        %v310 = vld [vmem:[%s238 + $0x118] sm:$0xff]
        %v311 = vld [vmem:[%s238 + $0x120] sm:$0xff]
        %v312 = vld [vmem:[%s238 + $0x128] sm:$0xff]
        %v313 = vld [vmem:[%s238 + $0x130] sm:$0xff]
        %v314 = vld [vmem:[%s238 + $0x138] sm:$0xff]
        %v315 = vld [vmem:[%s238 + $0x140] sm:$0xff]
        %v316 = vld [vmem:[%s238 + $0x148] sm:$0xff]
        %v317 = vld [vmem:[%s238 + $0x150] sm:$0xff]
        %v318 = vld [vmem:[%s238 + $0x158] sm:$0xff]
        %v319 = vld [vmem:[%s238 + $0x160] sm:$0xff]
        %v320 = vld [vmem:[%s238 + $0x168] sm:$0xff]
        %v321 = vld [vmem:[%s238 + $0x170] sm:$0xff]
        %v322 = vld [vmem:[%s238 + $0x178] sm:$0xff]
        %v323 = vld [vmem:[%s238 + $0x180] sm:$0xff]
        %v324 = vld [vmem:[%s238 + $0x188] sm:$0xff]
        %v325 = vld [vmem:[%s238 + $0x190] sm:$0xff]
        %v326 = vld [vmem:[%s238 + $0x198] sm:$0xff]
        %v327 = vld [vmem:[%s238 + $0x1a0] sm:$0xff]
        %v328 = vld [vmem:[%s238 + $0x1a8] sm:$0xff]
        %v329 = vld [vmem:[%s238 + $0x1b0] sm:$0xff]
        %v330 = vld [vmem:[%s238 + $0x1b8] sm:$0xff]
        %v331 = vld [vmem:[%s238 + $0x1c0] sm:$0xff]
        %v332 = vld [vmem:[%s238 + $0x1c8] sm:$0xff]
        %v333 = vld [vmem:[%s238 + $0x1d0] sm:$0xff]
        %v334 = vld [vmem:[%s238 + $0x1d8] sm:$0xff]
        %v335 = vld [vmem:[%s238 + $0x1e0] sm:$0xff]
        %v336 = vld [vmem:[%s238 + $0x1e8] sm:$0xff]
        %v337 = vld [vmem:[%s238 + $0x1f0] sm:$0xff]
        %v338 = vld [vmem:[%s238 + $0x1f8] sm:$0xff]
        %v339 = vpack.c.bf16 %v279, %v275
        %v340 = vpack.c.bf16 %v280, %v276
        %v341 = vpack.c.bf16 %v281, %v277
        %v342 = vpack.c.bf16 %v282, %v278
        %v343 = vpack.c.bf16 %v287, %v283
        %v344 = vpack.c.bf16 %v288, %v284
        %v345 = vpack.c.bf16 %v289, %v285
        %v346 = vpack.c.bf16 %v290, %v286
        %v347 = vpack.c.bf16 %v295, %v291
        %v348 = vpack.c.bf16 %v296, %v292
        %v349 = vpack.c.bf16 %v297, %v293
        %v350 = vpack.c.bf16 %v298, %v294
        %v351 = vpack.c.bf16 %v303, %v299
        %v352 = vpack.c.bf16 %v304, %v300
        %v353 = vpack.c.bf16 %v305, %v301
        %v354 = vpack.c.bf16 %v306, %v302
        %v355 = vpack.c.bf16 %v311, %v307
        %v356 = vpack.c.bf16 %v312, %v308
        %v357 = vpack.c.bf16 %v313, %v309
        %v358 = vpack.c.bf16 %v314, %v310
        %v359 = vpack.c.bf16 %v319, %v315
        %v360 = vpack.c.bf16 %v320, %v316
        %v361 = vpack.c.bf16 %v321, %v317
        %v362 = vpack.c.bf16 %v322, %v318
        %v363 = vpack.c.bf16 %v327, %v323
        %v364 = vpack.c.bf16 %v328, %v324
        %v365 = vpack.c.bf16 %v329, %v325
        %v366 = vpack.c.bf16 %v330, %v326
        %v367 = vpack.c.bf16 %v335, %v331
        %v368 = vpack.c.bf16 %v336, %v332
        %v369 = vpack.c.bf16 %v337, %v333
        %v370 = vpack.c.bf16 %v338, %v334
        %v371 = vld [vmem:[#allocation5] sm:$0xff]
        %v372 = vld [vmem:[#allocation5 + $0x8] sm:$0xff]
        %v373 = vld [vmem:[#allocation5 + $0x10] sm:$0xff]
        %v374 = vld [vmem:[#allocation5 + $0x18] sm:$0xff]
        %v375 = vld [vmem:[#allocation5 + $0x20] sm:$0xff]
        %v376 = vld [vmem:[#allocation5 + $0x28] sm:$0xff]
        %v377 = vld [vmem:[#allocation5 + $0x30] sm:$0xff]
        %v378 = vld [vmem:[#allocation5 + $0x38] sm:$0xff]
        %v379 = vld [vmem:[#allocation5 + $0x40] sm:$0xff]
        %v380 = vld [vmem:[#allocation5 + $0x48] sm:$0xff]
        %v381 = vld [vmem:[#allocation5 + $0x50] sm:$0xff]
        %v382 = vld [vmem:[#allocation5 + $0x58] sm:$0xff]
        %v383 = vld [vmem:[#allocation5 + $0x60] sm:$0xff]
        %v384 = vld [vmem:[#allocation5 + $0x68] sm:$0xff]
        %v385 = vld [vmem:[#allocation5 + $0x70] sm:$0xff]
        %v386 = vld [vmem:[#allocation5 + $0x78] sm:$0xff]
        %v387 = vld [vmem:[#allocation5 + $0x80] sm:$0xff]
        %v388 = vld [vmem:[#allocation5 + $0x88] sm:$0xff]
        %v389 = vld [vmem:[#allocation5 + $0x90] sm:$0xff]
        %v390 = vld [vmem:[#allocation5 + $0x98] sm:$0xff]
        %v391 = vld [vmem:[#allocation5 + $0xa0] sm:$0xff]
        %v392 = vld [vmem:[#allocation5 + $0xa8] sm:$0xff]
        %v393 = vld [vmem:[#allocation5 + $0xb0] sm:$0xff]
        %v394 = vld [vmem:[#allocation5 + $0xb8] sm:$0xff]
        %v395 = vld [vmem:[#allocation5 + $0xc0] sm:$0xff]
        %v396 = vld [vmem:[#allocation5 + $0xc8] sm:$0xff]
        %v397 = vld [vmem:[#allocation5 + $0xd0] sm:$0xff]
        %v398 = vld [vmem:[#allocation5 + $0xd8] sm:$0xff]
        %v399 = vld [vmem:[#allocation5 + $0xe0] sm:$0xff]
        %v400 = vld [vmem:[#allocation5 + $0xe8] sm:$0xff]
        %v401 = vld [vmem:[#allocation5 + $0xf0] sm:$0xff]
        %v402 = vld [vmem:[#allocation5 + $0xf8] sm:$0xff]
        %v403 = vld [vmem:[#allocation5 + $0x100] sm:$0xff]
        %v404 = vld [vmem:[#allocation5 + $0x108] sm:$0xff]
        %v405 = vld [vmem:[#allocation5 + $0x110] sm:$0xff]
        %v406 = vld [vmem:[#allocation5 + $0x118] sm:$0xff]
        %v407 = vld [vmem:[#allocation5 + $0x120] sm:$0xff]
        %v408 = vld [vmem:[#allocation5 + $0x128] sm:$0xff]
        %v409 = vld [vmem:[#allocation5 + $0x130] sm:$0xff]
        %v410 = vld [vmem:[#allocation5 + $0x138] sm:$0xff]
        %v411 = vld [vmem:[#allocation5 + $0x140] sm:$0xff]
        %v412 = vld [vmem:[#allocation5 + $0x148] sm:$0xff]
        %v413 = vld [vmem:[#allocation5 + $0x150] sm:$0xff]
        %v414 = vld [vmem:[#allocation5 + $0x158] sm:$0xff]
        %v415 = vld [vmem:[#allocation5 + $0x160] sm:$0xff]
        %v416 = vld [vmem:[#allocation5 + $0x168] sm:$0xff]
        %v417 = vld [vmem:[#allocation5 + $0x170] sm:$0xff]
        %v418 = vld [vmem:[#allocation5 + $0x178] sm:$0xff]
        %v419 = vld [vmem:[#allocation5 + $0x180] sm:$0xff]
        %v420 = vld [vmem:[#allocation5 + $0x188] sm:$0xff]
        %v421 = vld [vmem:[#allocation5 + $0x190] sm:$0xff]
        %v422 = vld [vmem:[#allocation5 + $0x198] sm:$0xff]
        %v423 = vld [vmem:[#allocation5 + $0x1a0] sm:$0xff]
        %v424 = vld [vmem:[#allocation5 + $0x1a8] sm:$0xff]
        %v425 = vld [vmem:[#allocation5 + $0x1b0] sm:$0xff]
        %v426 = vld [vmem:[#allocation5 + $0x1b8] sm:$0xff]
        %v427 = vld [vmem:[#allocation5 + $0x1c0] sm:$0xff]
        %v428 = vld [vmem:[#allocation5 + $0x1c8] sm:$0xff]
        %v429 = vld [vmem:[#allocation5 + $0x1d0] sm:$0xff]
        %v430 = vld [vmem:[#allocation5 + $0x1d8] sm:$0xff]
        %v431 = vld [vmem:[#allocation5 + $0x1e0] sm:$0xff]
        %v432 = vld [vmem:[#allocation5 + $0x1e8] sm:$0xff]
        %v433 = vld [vmem:[#allocation5 + $0x1f0] sm:$0xff]
        %v434 = vld [vmem:[#allocation5 + $0x1f8] sm:$0xff]
        %v435 = vld [vmem:[%s2] sm:$0x3]
        %v437 = vlaneseq
        %v438 = vshrl.u32 %v437, 7
        %v439 = vsub.s32 0, %v438
        %v440 = vrot.slane %v435, %v439
        %v441 = vlaneseq
        %v442 = vshrl.u32 %v441, 7
        %v443 = vsub.s32 1, %v442
        %v444 = vrot.slane %v435, %v443
        %v511 = vunpack.c.l.b16 %v371
        %v512 = vunpack.c.h.b16 %v371
        %v513 = vunpack.c.l.b16 %v372
        %v514 = vunpack.c.h.b16 %v372
        %v515 = vunpack.c.l.b16 %v373
        %v516 = vunpack.c.h.b16 %v373
        %v517 = vunpack.c.l.b16 %v374
        %v518 = vunpack.c.h.b16 %v374
        %v519 = vunpack.c.l.b16 %v375
        %v520 = vunpack.c.h.b16 %v375
        %v521 = vunpack.c.l.b16 %v376
        %v522 = vunpack.c.h.b16 %v376
        %v523 = vunpack.c.l.b16 %v377
        %v524 = vunpack.c.h.b16 %v377
        %v525 = vunpack.c.l.b16 %v378
        %v526 = vunpack.c.h.b16 %v378
        %v527 = vunpack.c.l.b16 %v379
        %v528 = vunpack.c.h.b16 %v379
        %v529 = vunpack.c.l.b16 %v380
        %v530 = vunpack.c.h.b16 %v380
        %v531 = vunpack.c.l.b16 %v381
        %v532 = vunpack.c.h.b16 %v381
        %v533 = vunpack.c.l.b16 %v382
        %v534 = vunpack.c.h.b16 %v382
        %v535 = vunpack.c.l.b16 %v383
        %v536 = vunpack.c.h.b16 %v383
        %v537 = vunpack.c.l.b16 %v384
        %v538 = vunpack.c.h.b16 %v384
        %v539 = vunpack.c.l.b16 %v385
        %v540 = vunpack.c.h.b16 %v385
        %v541 = vunpack.c.l.b16 %v386
        %v542 = vunpack.c.h.b16 %v386
        %v543 = vunpack.c.l.b16 %v387
        %v544 = vunpack.c.h.b16 %v387
        %v545 = vunpack.c.l.b16 %v388
        %v546 = vunpack.c.h.b16 %v388
        %v547 = vunpack.c.l.b16 %v389
        %v548 = vunpack.c.h.b16 %v389
        %v549 = vunpack.c.l.b16 %v390
        %v550 = vunpack.c.h.b16 %v390
        %v551 = vunpack.c.l.b16 %v391
        %v552 = vunpack.c.h.b16 %v391
        %v553 = vunpack.c.l.b16 %v392
        %v554 = vunpack.c.h.b16 %v392
        %v555 = vunpack.c.l.b16 %v393
        %v556 = vunpack.c.h.b16 %v393
        %v557 = vunpack.c.l.b16 %v394
        %v558 = vunpack.c.h.b16 %v394
        %v559 = vunpack.c.l.b16 %v395
        %v560 = vunpack.c.h.b16 %v395
        %v561 = vunpack.c.l.b16 %v396
        %v562 = vunpack.c.h.b16 %v396
        %v563 = vunpack.c.l.b16 %v397
        %v564 = vunpack.c.h.b16 %v397
        %v565 = vunpack.c.l.b16 %v398
        %v566 = vunpack.c.h.b16 %v398
        %v567 = vunpack.c.l.b16 %v399
        %v568 = vunpack.c.h.b16 %v399
        %v569 = vunpack.c.l.b16 %v400
        %v570 = vunpack.c.h.b16 %v400
        %v571 = vunpack.c.l.b16 %v401
        %v572 = vunpack.c.h.b16 %v401
        %v573 = vunpack.c.l.b16 %v402
        %v574 = vunpack.c.h.b16 %v402
        %v575 = vunpack.c.l.b16 %v403
        %v576 = vunpack.c.h.b16 %v403
        %v577 = vunpack.c.l.b16 %v404
        %v578 = vunpack.c.h.b16 %v404
        %v579 = vunpack.c.l.b16 %v405
        %v580 = vunpack.c.h.b16 %v405
        %v581 = vunpack.c.l.b16 %v406
        %v582 = vunpack.c.h.b16 %v406
        %v583 = vunpack.c.l.b16 %v407
        %v584 = vunpack.c.h.b16 %v407
        %v585 = vunpack.c.l.b16 %v408
        %v586 = vunpack.c.h.b16 %v408
        %v587 = vunpack.c.l.b16 %v409
        %v588 = vunpack.c.h.b16 %v409
        %v589 = vunpack.c.l.b16 %v410
        %v590 = vunpack.c.h.b16 %v410
        %v591 = vunpack.c.l.b16 %v411
        %v592 = vunpack.c.h.b16 %v411
        %v593 = vunpack.c.l.b16 %v412
        %v594 = vunpack.c.h.b16 %v412
        %v595 = vunpack.c.l.b16 %v413
        %v596 = vunpack.c.h.b16 %v413
        %v597 = vunpack.c.l.b16 %v414
        %v598 = vunpack.c.h.b16 %v414
        %v599 = vunpack.c.l.b16 %v415
        %v600 = vunpack.c.h.b16 %v415
        %v601 = vunpack.c.l.b16 %v416
        %v602 = vunpack.c.h.b16 %v416
        %v603 = vunpack.c.l.b16 %v417
        %v604 = vunpack.c.h.b16 %v417
        %v605 = vunpack.c.l.b16 %v418
        %v606 = vunpack.c.h.b16 %v418
        %v607 = vunpack.c.l.b16 %v419
        %v608 = vunpack.c.h.b16 %v419
        %v609 = vunpack.c.l.b16 %v420
        %v610 = vunpack.c.h.b16 %v420
        %v611 = vunpack.c.l.b16 %v421
        %v612 = vunpack.c.h.b16 %v421
        %v613 = vunpack.c.l.b16 %v422
        %v614 = vunpack.c.h.b16 %v422
        %v615 = vunpack.c.l.b16 %v423
        %v616 = vunpack.c.h.b16 %v423
        %v617 = vunpack.c.l.b16 %v424
        %v618 = vunpack.c.h.b16 %v424
        %v619 = vunpack.c.l.b16 %v425
        %v620 = vunpack.c.h.b16 %v425
        %v621 = vunpack.c.l.b16 %v426
        %v622 = vunpack.c.h.b16 %v426
        %v623 = vunpack.c.l.b16 %v427
        %v624 = vunpack.c.h.b16 %v427
        %v625 = vunpack.c.l.b16 %v428
        %v626 = vunpack.c.h.b16 %v428
        %v627 = vunpack.c.l.b16 %v429
        %v628 = vunpack.c.h.b16 %v429
        %v629 = vunpack.c.l.b16 %v430
        %v630 = vunpack.c.h.b16 %v430
        %v631 = vunpack.c.l.b16 %v431
        %v632 = vunpack.c.h.b16 %v431
        %v633 = vunpack.c.l.b16 %v432
        %v634 = vunpack.c.h.b16 %v432
        %v635 = vunpack.c.l.b16 %v433
        %v636 = vunpack.c.h.b16 %v433
        %v637 = vunpack.c.l.b16 %v434
        %v638 = vunpack.c.h.b16 %v434
        %v639 = vpack.c.b16 %v513, %v511
        %v640 = vpack.c.b16 %v514, %v512
        %v641 = vpack.c.b16 %v517, %v515
        %v642 = vpack.c.b16 %v518, %v516
        %v643 = vpack.c.b16 %v521, %v519
        %v644 = vpack.c.b16 %v522, %v520
        %v645 = vpack.c.b16 %v525, %v523
        %v646 = vpack.c.b16 %v526, %v524
        %v647 = vpack.c.b16 %v529, %v527
        %v648 = vpack.c.b16 %v530, %v528
        %v649 = vpack.c.b16 %v533, %v531
        %v650 = vpack.c.b16 %v534, %v532
        %v651 = vpack.c.b16 %v537, %v535
        %v652 = vpack.c.b16 %v538, %v536
        %v653 = vpack.c.b16 %v541, %v539
        %v654 = vpack.c.b16 %v542, %v540
        %v655 = vpack.c.b16 %v545, %v543
        %v656 = vpack.c.b16 %v546, %v544
        %v657 = vpack.c.b16 %v549, %v547
        %v658 = vpack.c.b16 %v550, %v548
        %v659 = vpack.c.b16 %v553, %v551
        %v660 = vpack.c.b16 %v554, %v552
        %v661 = vpack.c.b16 %v557, %v555
        %v662 = vpack.c.b16 %v558, %v556
        %v663 = vpack.c.b16 %v561, %v559
        %v664 = vpack.c.b16 %v562, %v560
        %v665 = vpack.c.b16 %v565, %v563
        %v666 = vpack.c.b16 %v566, %v564
        %v667 = vpack.c.b16 %v569, %v567
        %v668 = vpack.c.b16 %v570, %v568
        %v669 = vpack.c.b16 %v573, %v571
        %v670 = vpack.c.b16 %v574, %v572
        %v671 = vpack.c.b16 %v577, %v575
        %v672 = vpack.c.b16 %v578, %v576
        %v673 = vpack.c.b16 %v581, %v579
        %v674 = vpack.c.b16 %v582, %v580
        %v675 = vpack.c.b16 %v585, %v583
        %v676 = vpack.c.b16 %v586, %v584
        %v677 = vpack.c.b16 %v589, %v587
        %v678 = vpack.c.b16 %v590, %v588
        %v679 = vpack.c.b16 %v593, %v591
        %v680 = vpack.c.b16 %v594, %v592
        %v681 = vpack.c.b16 %v597, %v595
        %v682 = vpack.c.b16 %v598, %v596
        %v683 = vpack.c.b16 %v601, %v599
        %v684 = vpack.c.b16 %v602, %v600
        %v685 = vpack.c.b16 %v605, %v603
        %v686 = vpack.c.b16 %v606, %v604
        %v687 = vpack.c.b16 %v609, %v607
        %v688 = vpack.c.b16 %v610, %v608
        %v689 = vpack.c.b16 %v613, %v611
        %v690 = vpack.c.b16 %v614, %v612
        %v691 = vpack.c.b16 %v617, %v615
        %v692 = vpack.c.b16 %v618, %v616
        %v693 = vpack.c.b16 %v621, %v619
        %v694 = vpack.c.b16 %v622, %v620
        %v695 = vpack.c.b16 %v625, %v623
        %v696 = vpack.c.b16 %v626, %v624
        %v697 = vpack.c.b16 %v629, %v627
        %v698 = vpack.c.b16 %v630, %v628
        %v699 = vpack.c.b16 %v633, %v631
        %v700 = vpack.c.b16 %v634, %v632
        %v701 = vpack.c.b16 %v637, %v635
        %v702 = vpack.c.b16 %v638, %v636
        %767 = vmatprep.subr.bf16.mxu0 %v654
        %768 = vmatpush1.bf16.msra.mxu0 %v653
        %769 = vmatprep.subr.bf16.mxu0 %v652
        %770 = vmatpush1.bf16.msra.mxu0 %v651
        %771 = vmatprep.subr.bf16.mxu0 %v650
        %772 = vmatpush1.bf16.msra.mxu0 %v649
        %773 = vmatprep.subr.bf16.mxu0 %v648
        %774 = vmatpush1.bf16.msra.mxu0 %v647
        %775 = vmatprep.subr.bf16.mxu0 %v646
        %776 = vmatpush1.bf16.msra.mxu0 %v645
        %777 = vmatprep.subr.bf16.mxu0 %v644
        %778 = vmatpush1.bf16.msra.mxu0 %v643
        %779 = vmatprep.subr.bf16.mxu0 %v642
        %780 = vmatpush1.bf16.msra.mxu0 %v641
        %781 = vmatprep.subr.bf16.mxu0 %v640
        %782 = vmatpush1.bf16.msra.mxu0 %v639
        %783 = vmatprep.subr.bf16.mxu0 %v670
        %784 = vmatpush2.bf16.msra.mxu0 %v669
        %785 = vmatprep.subr.bf16.mxu0 %v668
        %786 = vmatpush2.bf16.msra.mxu0 %v667
        %787 = vmatprep.subr.bf16.mxu0 %v666
        %788 = vmatpush2.bf16.msra.mxu0 %v665
        %789 = vmatprep.subr.bf16.mxu0 %v664
        %790 = vmatpush2.bf16.msra.mxu0 %v663
        %791 = vmatprep.subr.bf16.mxu0 %v662
        %792 = vmatpush2.bf16.msra.mxu0 %v661
        %793 = vmatprep.subr.bf16.mxu0 %v660
        %794 = vmatpush2.bf16.msra.mxu0 %v659
        %795 = vmatprep.subr.bf16.mxu0 %v658
        %796 = vmatpush2.bf16.msra.mxu0 %v657
        %797 = vmatprep.subr.bf16.mxu0 %v656
        %798 = vmatpush2.bf16.msra.mxu0 %v655
        %799 = vmatprep.mubr.bf16.mxu0 %v340
        %800 = vmatmul.mubr.bf16.gmra.mxu0 %v339
        %v801 = vpop.f32.mrf.mxu0
        %v802 = vadd.f32 %v440, %v801
        %v803 = vpop.f32.mrf.mxu0
        %v804 = vadd.f32 %v444, %v803
        %v805 = vpop.f32.mrf.mxu0
        %v806 = vadd.f32 %v440, %v805
        %v807 = vpop.f32.mrf.mxu0
        %v808 = vadd.f32 %v444, %v807
        %809 = vmatprep.mubr.bf16.mxu0 %v344
        %810 = vmatmul.mubr.bf16.gmra.mxu0 %v343
        %v811 = vpop.f32.mrf.mxu0
        %v812 = vadd.f32 %v440, %v811
        %v813 = vpop.f32.mrf.mxu0
        %v814 = vadd.f32 %v444, %v813
        %v815 = vpop.f32.mrf.mxu0
        %v816 = vadd.f32 %v440, %v815
        %v817 = vpop.f32.mrf.mxu0
        %v818 = vadd.f32 %v444, %v817
        %819 = vmatprep.mubr.bf16.mxu0 %v348
        %820 = vmatmul.mubr.bf16.gmra.mxu0 %v347
        %v821 = vpop.f32.mrf.mxu0
        %v822 = vadd.f32 %v440, %v821
        %v823 = vpop.f32.mrf.mxu0
        %v824 = vadd.f32 %v444, %v823
        %v825 = vpop.f32.mrf.mxu0
        %v826 = vadd.f32 %v440, %v825
        %v827 = vpop.f32.mrf.mxu0
        %v828 = vadd.f32 %v444, %v827
        %829 = vmatprep.mubr.bf16.mxu0 %v352
        %830 = vmatmul.mubr.bf16.gmra.mxu0 %v351
        %v831 = vpop.f32.mrf.mxu0
        %v832 = vadd.f32 %v440, %v831
        %v833 = vpop.f32.mrf.mxu0
        %v834 = vadd.f32 %v444, %v833
        %v835 = vpop.f32.mrf.mxu0
        %v836 = vadd.f32 %v440, %v835
        %v837 = vpop.f32.mrf.mxu0
        %v838 = vadd.f32 %v444, %v837
        %839 = vmatprep.mubr.bf16.mxu0 %v356
        %840 = vmatmul.mubr.bf16.gmra.mxu0 %v355
        %v841 = vpop.f32.mrf.mxu0
        %v842 = vadd.f32 %v440, %v841
        %v843 = vpop.f32.mrf.mxu0
        %v844 = vadd.f32 %v444, %v843
        %v845 = vpop.f32.mrf.mxu0
        %v846 = vadd.f32 %v440, %v845
        %v847 = vpop.f32.mrf.mxu0
        %v848 = vadd.f32 %v444, %v847
        %849 = vmatprep.mubr.bf16.mxu0 %v360
        %850 = vmatmul.mubr.bf16.gmra.mxu0 %v359
        %v851 = vpop.f32.mrf.mxu0
        %v852 = vadd.f32 %v440, %v851
        %v853 = vpop.f32.mrf.mxu0
        %v854 = vadd.f32 %v444, %v853
        %v855 = vpop.f32.mrf.mxu0
        %v856 = vadd.f32 %v440, %v855
        %v857 = vpop.f32.mrf.mxu0
        %v858 = vadd.f32 %v444, %v857
        %859 = vmatprep.mubr.bf16.mxu0 %v364
        %860 = vmatmul.mubr.bf16.gmra.mxu0 %v363
        %v861 = vpop.f32.mrf.mxu0
        %v862 = vadd.f32 %v440, %v861
        %v863 = vpop.f32.mrf.mxu0
        %v864 = vadd.f32 %v444, %v863
        %v865 = vpop.f32.mrf.mxu0
        %v866 = vadd.f32 %v440, %v865
        %v867 = vpop.f32.mrf.mxu0
        %v868 = vadd.f32 %v444, %v867
        %869 = vmatprep.mubr.bf16.mxu0 %v368
        %870 = vmatmul.mubr.bf16.gmra.mxu0 %v367
        %v871 = vpop.f32.mrf.mxu0
        %v872 = vadd.f32 %v440, %v871
        %v873 = vpop.f32.mrf.mxu0
        %v874 = vadd.f32 %v444, %v873
        %v875 = vpop.f32.mrf.mxu0
        %v876 = vadd.f32 %v440, %v875
        %v877 = vpop.f32.mrf.mxu0
        %v878 = vadd.f32 %v444, %v877
        %879 = vdwg.mxu0
        %880 = vmatprep.subr.bf16.mxu0 %v686
        %881 = vmatpush1.bf16.msra.mxu0 %v685
        %882 = vmatprep.subr.bf16.mxu0 %v684
        %883 = vmatpush1.bf16.msra.mxu0 %v683
        %884 = vmatprep.subr.bf16.mxu0 %v682
        %885 = vmatpush1.bf16.msra.mxu0 %v681
        %886 = vmatprep.subr.bf16.mxu0 %v680
        %887 = vmatpush1.bf16.msra.mxu0 %v679
        %888 = vmatprep.subr.bf16.mxu0 %v678
        %889 = vmatpush1.bf16.msra.mxu0 %v677
        %890 = vmatprep.subr.bf16.mxu0 %v676
        %891 = vmatpush1.bf16.msra.mxu0 %v675
        %892 = vmatprep.subr.bf16.mxu0 %v674
        %893 = vmatpush1.bf16.msra.mxu0 %v673
        %894 = vmatprep.subr.bf16.mxu0 %v672
        %895 = vmatpush1.bf16.msra.mxu0 %v671
        %896 = vmatprep.subr.bf16.mxu0 %v702
        %897 = vmatpush2.bf16.msra.mxu0 %v701
        %898 = vmatprep.subr.bf16.mxu0 %v700
        %899 = vmatpush2.bf16.msra.mxu0 %v699
        %900 = vmatprep.subr.bf16.mxu0 %v698
        %901 = vmatpush2.bf16.msra.mxu0 %v697
        %902 = vmatprep.subr.bf16.mxu0 %v696
        %903 = vmatpush2.bf16.msra.mxu0 %v695
        %904 = vmatprep.subr.bf16.mxu0 %v694
        %905 = vmatpush2.bf16.msra.mxu0 %v693
        %906 = vmatprep.subr.bf16.mxu0 %v692
        %907 = vmatpush2.bf16.msra.mxu0 %v691
        %908 = vmatprep.subr.bf16.mxu0 %v690
        %909 = vmatpush2.bf16.msra.mxu0 %v689
        %910 = vmatprep.subr.bf16.mxu0 %v688
        %911 = vmatpush2.bf16.msra.mxu0 %v687
        %912 = vmatprep.mubr.bf16.mxu0 %v342
        %913 = vmatmul.mubr.bf16.gmra.mxu0 %v341
        %v914 = vpop.f32.mrf.mxu0
        %v915 = vadd.f32 %v802, %v914
        %v916 = vpop.f32.mrf.mxu0
        %v917 = vadd.f32 %v804, %v916
        %v918 = vpop.f32.mrf.mxu0
        %v919 = vadd.f32 %v806, %v918
        %v920 = vpop.f32.mrf.mxu0
        %v921 = vadd.f32 %v808, %v920
        %922 = vmatprep.mubr.bf16.mxu0 %v346
        %923 = vmatmul.mubr.bf16.gmra.mxu0 %v345
        %v924 = vpop.f32.mrf.mxu0
        %v925 = vadd.f32 %v812, %v924
        %v926 = vpop.f32.mrf.mxu0
        %v927 = vadd.f32 %v814, %v926
        %v928 = vpop.f32.mrf.mxu0
        %v929 = vadd.f32 %v816, %v928
        %v930 = vpop.f32.mrf.mxu0
        %v931 = vadd.f32 %v818, %v930
        %932 = vmatprep.mubr.bf16.mxu0 %v350
        %933 = vmatmul.mubr.bf16.gmra.mxu0 %v349
        %v934 = vpop.f32.mrf.mxu0
        %v935 = vadd.f32 %v822, %v934
        %v936 = vpop.f32.mrf.mxu0
        %v937 = vadd.f32 %v824, %v936
        %v938 = vpop.f32.mrf.mxu0
        %v939 = vadd.f32 %v826, %v938
        %v940 = vpop.f32.mrf.mxu0
        %v941 = vadd.f32 %v828, %v940
        %942 = vmatprep.mubr.bf16.mxu0 %v354
        %943 = vmatmul.mubr.bf16.gmra.mxu0 %v353
        %v944 = vpop.f32.mrf.mxu0
        %v945 = vadd.f32 %v832, %v944
        %v946 = vpop.f32.mrf.mxu0
        %v947 = vadd.f32 %v834, %v946
        %v948 = vpop.f32.mrf.mxu0
        %v949 = vadd.f32 %v836, %v948
        %v950 = vpop.f32.mrf.mxu0
        %v951 = vadd.f32 %v838, %v950
        %952 = vmatprep.mubr.bf16.mxu0 %v358
        %953 = vmatmul.mubr.bf16.gmra.mxu0 %v357
        %v954 = vpop.f32.mrf.mxu0
        %v955 = vadd.f32 %v842, %v954
        %v956 = vpop.f32.mrf.mxu0
        %v957 = vadd.f32 %v844, %v956
        %v958 = vpop.f32.mrf.mxu0
        %v959 = vadd.f32 %v846, %v958
        %v960 = vpop.f32.mrf.mxu0
        %v961 = vadd.f32 %v848, %v960
        %962 = vmatprep.mubr.bf16.mxu0 %v362
        %963 = vmatmul.mubr.bf16.gmra.mxu0 %v361
        %v964 = vpop.f32.mrf.mxu0
        %v965 = vadd.f32 %v852, %v964
        %v966 = vpop.f32.mrf.mxu0
        %v967 = vadd.f32 %v854, %v966
        %v968 = vpop.f32.mrf.mxu0
        %v969 = vadd.f32 %v856, %v968
        %v970 = vpop.f32.mrf.mxu0
        %v971 = vadd.f32 %v858, %v970
        %972 = vmatprep.mubr.bf16.mxu0 %v366
        %973 = vmatmul.mubr.bf16.gmra.mxu0 %v365
        %v974 = vpop.f32.mrf.mxu0
        %v975 = vadd.f32 %v862, %v974
        %v976 = vpop.f32.mrf.mxu0
        %v977 = vadd.f32 %v864, %v976
        %v978 = vpop.f32.mrf.mxu0
        %v979 = vadd.f32 %v866, %v978
        %v980 = vpop.f32.mrf.mxu0
        %v981 = vadd.f32 %v868, %v980
        %982 = vmatprep.mubr.bf16.mxu0 %v370
        %983 = vmatmul.mubr.bf16.gmra.mxu0 %v369
        %v984 = vpop.f32.mrf.mxu0
        %v985 = vadd.f32 %v872, %v984
        %v986 = vpop.f32.mrf.mxu0
        %v987 = vadd.f32 %v874, %v986
        %v988 = vpop.f32.mrf.mxu0
        %v989 = vadd.f32 %v876, %v988
        %v990 = vpop.f32.mrf.mxu0
        %v991 = vadd.f32 %v878, %v990
        %992 = vdwg.mxu0
        %v993 = vmax.f32 %v915, 0.0
        %v994 = vmax.f32 %v917, 0.0
        %v995 = vmax.f32 %v919, 0.0
        %v996 = vmax.f32 %v921, 0.0
        %v997 = vmax.f32 %v925, 0.0
        %v998 = vmax.f32 %v927, 0.0
        %v999 = vmax.f32 %v929, 0.0
        %v1000 = vmax.f32 %v931, 0.0
        %v1001 = vmax.f32 %v935, 0.0
        %v1002 = vmax.f32 %v937, 0.0
        %v1003 = vmax.f32 %v939, 0.0
        %v1004 = vmax.f32 %v941, 0.0
        %v1005 = vmax.f32 %v945, 0.0
        %v1006 = vmax.f32 %v947, 0.0
        %v1007 = vmax.f32 %v949, 0.0
        %v1008 = vmax.f32 %v951, 0.0
        %v1009 = vmax.f32 %v955, 0.0
        %v1010 = vmax.f32 %v957, 0.0
        %v1011 = vmax.f32 %v959, 0.0
        %v1012 = vmax.f32 %v961, 0.0
        %v1013 = vmax.f32 %v965, 0.0
        %v1014 = vmax.f32 %v967, 0.0
        %v1015 = vmax.f32 %v969, 0.0
        %v1016 = vmax.f32 %v971, 0.0
        %v1017 = vmax.f32 %v975, 0.0
        %v1018 = vmax.f32 %v977, 0.0
        %v1019 = vmax.f32 %v979, 0.0
        %v1020 = vmax.f32 %v981, 0.0
        %v1021 = vmax.f32 %v985, 0.0
        %v1022 = vmax.f32 %v987, 0.0
        %v1023 = vmax.f32 %v989, 0.0
        %v1024 = vmax.f32 %v991, 0.0
        %v1025 = vpack.c.bf16 %v995, %v993
        %v1026 = vpack.c.bf16 %v996, %v994
        %v1027 = vpack.c.bf16 %v999, %v997
        %v1028 = vpack.c.bf16 %v1000, %v998
        %v1029 = vpack.c.bf16 %v1003, %v1001
        %v1030 = vpack.c.bf16 %v1004, %v1002
        %v1031 = vpack.c.bf16 %v1007, %v1005
        %v1032 = vpack.c.bf16 %v1008, %v1006
        %v1033 = vpack.c.bf16 %v1011, %v1009
        %v1034 = vpack.c.bf16 %v1012, %v1010
        %v1035 = vpack.c.bf16 %v1015, %v1013
        %v1036 = vpack.c.bf16 %v1016, %v1014
        %v1037 = vpack.c.bf16 %v1019, %v1017
        %v1038 = vpack.c.bf16 %v1020, %v1018
        %v1039 = vpack.c.bf16 %v1023, %v1021
        %v1040 = vpack.c.bf16 %v1024, %v1022
        %v1041 = vld [vmem:[#allocation7] sm:$0xff]
        %v1042 = vld [vmem:[#allocation7 + $0x8] sm:$0xff]
        %v1043 = vld [vmem:[#allocation7 + $0x10] sm:$0xff]
        %v1044 = vld [vmem:[#allocation7 + $0x18] sm:$0xff]
        %v1045 = vld [vmem:[#allocation7 + $0x20] sm:$0xff]
        %v1046 = vld [vmem:[#allocation7 + $0x28] sm:$0xff]
        %v1047 = vld [vmem:[#allocation7 + $0x30] sm:$0xff]
        %v1048 = vld [vmem:[#allocation7 + $0x38] sm:$0xff]
        %v1049 = vld [vmem:[#allocation7 + $0x40] sm:$0xff]
        %v1050 = vld [vmem:[#allocation7 + $0x48] sm:$0xff]
        %v1051 = vld [vmem:[#allocation7 + $0x50] sm:$0xff]
        %v1052 = vld [vmem:[#allocation7 + $0x58] sm:$0xff]
        %v1053 = vld [vmem:[#allocation7 + $0x60] sm:$0xff]
        %v1054 = vld [vmem:[#allocation7 + $0x68] sm:$0xff]
        %v1055 = vld [vmem:[#allocation7 + $0x70] sm:$0xff]
        %v1056 = vld [vmem:[#allocation7 + $0x78] sm:$0xff]
        %v1057 = vld [vmem:[#allocation7 + $0x80] sm:$0xff]
        %v1058 = vld [vmem:[#allocation7 + $0x88] sm:$0xff]
        %v1059 = vld [vmem:[#allocation7 + $0x90] sm:$0xff]
        %v1060 = vld [vmem:[#allocation7 + $0x98] sm:$0xff]
        %v1061 = vld [vmem:[#allocation7 + $0xa0] sm:$0xff]
        %v1062 = vld [vmem:[#allocation7 + $0xa8] sm:$0xff]
        %v1063 = vld [vmem:[#allocation7 + $0xb0] sm:$0xff]
        %v1064 = vld [vmem:[#allocation7 + $0xb8] sm:$0xff]
        %v1065 = vld [vmem:[#allocation7 + $0xc0] sm:$0xff]
        %v1066 = vld [vmem:[#allocation7 + $0xc8] sm:$0xff]
        %v1067 = vld [vmem:[#allocation7 + $0xd0] sm:$0xff]
        %v1068 = vld [vmem:[#allocation7 + $0xd8] sm:$0xff]
        %v1069 = vld [vmem:[#allocation7 + $0xe0] sm:$0xff]
        %v1070 = vld [vmem:[#allocation7 + $0xe8] sm:$0xff]
        %v1071 = vld [vmem:[#allocation7 + $0xf0] sm:$0xff]
        %v1072 = vld [vmem:[#allocation7 + $0xf8] sm:$0xff]
        %v1073 = vld [vmem:[%s4] sm:$0x3]
        %v1075 = vlaneseq
        %v1076 = vshrl.u32 %v1075, 7
        %v1077 = vsub.s32 0, %v1076
        %v1078 = vrot.slane %v1073, %v1077
        %v1079 = vlaneseq
        %v1080 = vshrl.u32 %v1079, 7
        %v1081 = vsub.s32 1, %v1080
        %v1082 = vrot.slane %v1073, %v1081
        %v1117 = vunpack.c.l.b16 %v1041
        %v1118 = vunpack.c.h.b16 %v1041
        %v1119 = vunpack.c.l.b16 %v1042
        %v1120 = vunpack.c.h.b16 %v1042
        %v1121 = vunpack.c.l.b16 %v1043
        %v1122 = vunpack.c.h.b16 %v1043
        %v1123 = vunpack.c.l.b16 %v1044
        %v1124 = vunpack.c.h.b16 %v1044
        %v1125 = vunpack.c.l.b16 %v1045
        %v1126 = vunpack.c.h.b16 %v1045
        %v1127 = vunpack.c.l.b16 %v1046
        %v1128 = vunpack.c.h.b16 %v1046
        %v1129 = vunpack.c.l.b16 %v1047
        %v1130 = vunpack.c.h.b16 %v1047
        %v1131 = vunpack.c.l.b16 %v1048
        %v1132 = vunpack.c.h.b16 %v1048
        %v1133 = vunpack.c.l.b16 %v1049
        %v1134 = vunpack.c.h.b16 %v1049
        %v1135 = vunpack.c.l.b16 %v1050
        %v1136 = vunpack.c.h.b16 %v1050
        %v1137 = vunpack.c.l.b16 %v1051
        %v1138 = vunpack.c.h.b16 %v1051
        %v1139 = vunpack.c.l.b16 %v1052
        %v1140 = vunpack.c.h.b16 %v1052
        %v1141 = vunpack.c.l.b16 %v1053
        %v1142 = vunpack.c.h.b16 %v1053
        %v1143 = vunpack.c.l.b16 %v1054
        %v1144 = vunpack.c.h.b16 %v1054
        %v1145 = vunpack.c.l.b16 %v1055
        %v1146 = vunpack.c.h.b16 %v1055
        %v1147 = vunpack.c.l.b16 %v1056
        %v1148 = vunpack.c.h.b16 %v1056
        %v1149 = vunpack.c.l.b16 %v1057
        %v1150 = vunpack.c.h.b16 %v1057
        %v1151 = vunpack.c.l.b16 %v1058
        %v1152 = vunpack.c.h.b16 %v1058
        %v1153 = vunpack.c.l.b16 %v1059
        %v1154 = vunpack.c.h.b16 %v1059
        %v1155 = vunpack.c.l.b16 %v1060
        %v1156 = vunpack.c.h.b16 %v1060
        %v1157 = vunpack.c.l.b16 %v1061
        %v1158 = vunpack.c.h.b16 %v1061
        %v1159 = vunpack.c.l.b16 %v1062
        %v1160 = vunpack.c.h.b16 %v1062
        %v1161 = vunpack.c.l.b16 %v1063
        %v1162 = vunpack.c.h.b16 %v1063
        %v1163 = vunpack.c.l.b16 %v1064
        %v1164 = vunpack.c.h.b16 %v1064
        %v1165 = vunpack.c.l.b16 %v1065
        %v1166 = vunpack.c.h.b16 %v1065
        %v1167 = vunpack.c.l.b16 %v1066
        %v1168 = vunpack.c.h.b16 %v1066
        %v1169 = vunpack.c.l.b16 %v1067
        %v1170 = vunpack.c.h.b16 %v1067
        %v1171 = vunpack.c.l.b16 %v1068
        %v1172 = vunpack.c.h.b16 %v1068
        %v1173 = vunpack.c.l.b16 %v1069
        %v1174 = vunpack.c.h.b16 %v1069
        %v1175 = vunpack.c.l.b16 %v1070
        %v1176 = vunpack.c.h.b16 %v1070
        %v1177 = vunpack.c.l.b16 %v1071
        %v1178 = vunpack.c.h.b16 %v1071
        %v1179 = vunpack.c.l.b16 %v1072
        %v1180 = vunpack.c.h.b16 %v1072
        %v1181 = vpack.c.b16 %v1119, %v1117
        %v1182 = vpack.c.b16 %v1120, %v1118
        %v1183 = vpack.c.b16 %v1123, %v1121
        %v1184 = vpack.c.b16 %v1124, %v1122
        %v1185 = vpack.c.b16 %v1127, %v1125
        %v1186 = vpack.c.b16 %v1128, %v1126
        %v1187 = vpack.c.b16 %v1131, %v1129
        %v1188 = vpack.c.b16 %v1132, %v1130
        %v1189 = vpack.c.b16 %v1135, %v1133
        %v1190 = vpack.c.b16 %v1136, %v1134
        %v1191 = vpack.c.b16 %v1139, %v1137
        %v1192 = vpack.c.b16 %v1140, %v1138
        %v1193 = vpack.c.b16 %v1143, %v1141
        %v1194 = vpack.c.b16 %v1144, %v1142
        %v1195 = vpack.c.b16 %v1147, %v1145
        %v1196 = vpack.c.b16 %v1148, %v1146
        %v1197 = vpack.c.b16 %v1151, %v1149
        %v1198 = vpack.c.b16 %v1152, %v1150
        %v1199 = vpack.c.b16 %v1155, %v1153
        %v1200 = vpack.c.b16 %v1156, %v1154
        %v1201 = vpack.c.b16 %v1159, %v1157
        %v1202 = vpack.c.b16 %v1160, %v1158
        %v1203 = vpack.c.b16 %v1163, %v1161
        %v1204 = vpack.c.b16 %v1164, %v1162
        %v1205 = vpack.c.b16 %v1167, %v1165
        %v1206 = vpack.c.b16 %v1168, %v1166
        %v1207 = vpack.c.b16 %v1171, %v1169
        %v1208 = vpack.c.b16 %v1172, %v1170
        %v1209 = vpack.c.b16 %v1175, %v1173
        %v1210 = vpack.c.b16 %v1176, %v1174
        %v1211 = vpack.c.b16 %v1179, %v1177
        %v1212 = vpack.c.b16 %v1180, %v1178
        %1245 = vmatprep.subr.bf16.mxu0 %v1196
        %1246 = vmatpush1.bf16.msra.mxu0 %v1195
        %1247 = vmatprep.subr.bf16.mxu0 %v1194
        %1248 = vmatpush1.bf16.msra.mxu0 %v1193
        %1249 = vmatprep.subr.bf16.mxu0 %v1192
        %1250 = vmatpush1.bf16.msra.mxu0 %v1191
        %1251 = vmatprep.subr.bf16.mxu0 %v1190
        %1252 = vmatpush1.bf16.msra.mxu0 %v1189
        %1253 = vmatprep.subr.bf16.mxu0 %v1188
        %1254 = vmatpush1.bf16.msra.mxu0 %v1187
        %1255 = vmatprep.subr.bf16.mxu0 %v1186
        %1256 = vmatpush1.bf16.msra.mxu0 %v1185
        %1257 = vmatprep.subr.bf16.mxu0 %v1184
        %1258 = vmatpush1.bf16.msra.mxu0 %v1183
        %1259 = vmatprep.subr.bf16.mxu0 %v1182
        %1260 = vmatpush1.bf16.msra.mxu0 %v1181
        %1261 = vmatprep.subr.bf16.mxu0 %v1212
        %1262 = vmatpush2.bf16.msra.mxu0 %v1211
        %1263 = vmatprep.subr.bf16.mxu0 %v1210
        %1264 = vmatpush2.bf16.msra.mxu0 %v1209
        %1265 = vmatprep.subr.bf16.mxu0 %v1208
        %1266 = vmatpush2.bf16.msra.mxu0 %v1207
        %1267 = vmatprep.subr.bf16.mxu0 %v1206
        %1268 = vmatpush2.bf16.msra.mxu0 %v1205
        %1269 = vmatprep.subr.bf16.mxu0 %v1204
        %1270 = vmatpush2.bf16.msra.mxu0 %v1203
        %1271 = vmatprep.subr.bf16.mxu0 %v1202
        %1272 = vmatpush2.bf16.msra.mxu0 %v1201
        %1273 = vmatprep.subr.bf16.mxu0 %v1200
        %1274 = vmatpush2.bf16.msra.mxu0 %v1199
        %1275 = vmatprep.subr.bf16.mxu0 %v1198
        %1276 = vmatpush2.bf16.msra.mxu0 %v1197
        %1277 = vmatprep.mubr.bf16.mxu0 %v1026
        %1278 = vmatmul.mubr.bf16.gmra.mxu0 %v1025
        %v1279 = vpop.f32.mrf.mxu0
        %v1280 = vadd.f32 %v1078, %v1279
        %v1281 = vpop.f32.mrf.mxu0
        %v1282 = vadd.f32 %v1082, %v1281
        %v1283 = vpop.f32.mrf.mxu0
        %v1284 = vadd.f32 %v1078, %v1283
        %v1285 = vpop.f32.mrf.mxu0
        %v1286 = vadd.f32 %v1082, %v1285
        %1287 = vmatprep.mubr.bf16.mxu0 %v1028
        %1288 = vmatmul.mubr.bf16.gmra.mxu0 %v1027
        %v1289 = vpop.f32.mrf.mxu0
        %v1290 = vadd.f32 %v1078, %v1289
        %v1291 = vpop.f32.mrf.mxu0
        %v1292 = vadd.f32 %v1082, %v1291
        %v1293 = vpop.f32.mrf.mxu0
        %v1294 = vadd.f32 %v1078, %v1293
        %v1295 = vpop.f32.mrf.mxu0
        %v1296 = vadd.f32 %v1082, %v1295
        %1297 = vmatprep.mubr.bf16.mxu0 %v1030
        %1298 = vmatmul.mubr.bf16.gmra.mxu0 %v1029
        %v1299 = vpop.f32.mrf.mxu0
        %v1300 = vadd.f32 %v1078, %v1299
        %v1301 = vpop.f32.mrf.mxu0
        %v1302 = vadd.f32 %v1082, %v1301
        %v1303 = vpop.f32.mrf.mxu0
        %v1304 = vadd.f32 %v1078, %v1303
        %v1305 = vpop.f32.mrf.mxu0
        %v1306 = vadd.f32 %v1082, %v1305
        %1307 = vmatprep.mubr.bf16.mxu0 %v1032
        %1308 = vmatmul.mubr.bf16.gmra.mxu0 %v1031
        %v1309 = vpop.f32.mrf.mxu0
        %v1310 = vadd.f32 %v1078, %v1309
        %v1311 = vpop.f32.mrf.mxu0
        %v1312 = vadd.f32 %v1082, %v1311
        %v1313 = vpop.f32.mrf.mxu0
        %v1314 = vadd.f32 %v1078, %v1313
        %v1315 = vpop.f32.mrf.mxu0
        %v1316 = vadd.f32 %v1082, %v1315
        %1317 = vmatprep.mubr.bf16.mxu0 %v1034
        %1318 = vmatmul.mubr.bf16.gmra.mxu0 %v1033
        %v1319 = vpop.f32.mrf.mxu0
        %v1320 = vadd.f32 %v1078, %v1319
        %v1321 = vpop.f32.mrf.mxu0
        %v1322 = vadd.f32 %v1082, %v1321
        %v1323 = vpop.f32.mrf.mxu0
        %v1324 = vadd.f32 %v1078, %v1323
        %v1325 = vpop.f32.mrf.mxu0
        %v1326 = vadd.f32 %v1082, %v1325
        %1327 = vmatprep.mubr.bf16.mxu0 %v1036
        %1328 = vmatmul.mubr.bf16.gmra.mxu0 %v1035
        %v1329 = vpop.f32.mrf.mxu0
        %v1330 = vadd.f32 %v1078, %v1329
        %v1331 = vpop.f32.mrf.mxu0
        %v1332 = vadd.f32 %v1082, %v1331
        %v1333 = vpop.f32.mrf.mxu0
        %v1334 = vadd.f32 %v1078, %v1333
        %v1335 = vpop.f32.mrf.mxu0
        %v1336 = vadd.f32 %v1082, %v1335
        %1337 = vmatprep.mubr.bf16.mxu0 %v1038
        %1338 = vmatmul.mubr.bf16.gmra.mxu0 %v1037
        %v1339 = vpop.f32.mrf.mxu0
        %v1340 = vadd.f32 %v1078, %v1339
        %v1341 = vpop.f32.mrf.mxu0
        %v1342 = vadd.f32 %v1082, %v1341
        %v1343 = vpop.f32.mrf.mxu0
        %v1344 = vadd.f32 %v1078, %v1343
        %v1345 = vpop.f32.mrf.mxu0
        %v1346 = vadd.f32 %v1082, %v1345
        %1347 = vmatprep.mubr.bf16.mxu0 %v1040
        %1348 = vmatmul.mubr.bf16.gmra.mxu0 %v1039
        %v1349 = vpop.f32.mrf.mxu0
        %v1350 = vadd.f32 %v1078, %v1349
        %v1351 = vpop.f32.mrf.mxu0
        %v1352 = vadd.f32 %v1082, %v1351
        %v1353 = vpop.f32.mrf.mxu0
        %v1354 = vadd.f32 %v1078, %v1353
        %v1355 = vpop.f32.mrf.mxu0
        %v1356 = vadd.f32 %v1082, %v1355
        %1357 = vdwg.mxu0
        %1358 = vst [vmem:[%s272] sm:$0xff] %v1280
        %1359 = vst [vmem:[%s272 + $0x8] sm:$0xff] %v1282
        %1360 = vst [vmem:[%s272 + $0x10] sm:$0xff] %v1284
        %1361 = vst [vmem:[%s272 + $0x18] sm:$0xff] %v1286
        %1362 = vst [vmem:[%s272 + $0x20] sm:$0xff] %v1290
        %1363 = vst [vmem:[%s272 + $0x28] sm:$0xff] %v1292
        %1364 = vst [vmem:[%s272 + $0x30] sm:$0xff] %v1294
        %1365 = vst [vmem:[%s272 + $0x38] sm:$0xff] %v1296
        %1366 = vst [vmem:[%s272 + $0x40] sm:$0xff] %v1300
        %1367 = vst [vmem:[%s272 + $0x48] sm:$0xff] %v1302
        %1368 = vst [vmem:[%s272 + $0x50] sm:$0xff] %v1304
        %1369 = vst [vmem:[%s272 + $0x58] sm:$0xff] %v1306
        %1370 = vst [vmem:[%s272 + $0x60] sm:$0xff] %v1310
        %1371 = vst [vmem:[%s272 + $0x68] sm:$0xff] %v1312
        %1372 = vst [vmem:[%s272 + $0x70] sm:$0xff] %v1314
        %1373 = vst [vmem:[%s272 + $0x78] sm:$0xff] %v1316
        %1374 = vst [vmem:[%s272 + $0x80] sm:$0xff] %v1320
        %1375 = vst [vmem:[%s272 + $0x88] sm:$0xff] %v1322
        %1376 = vst [vmem:[%s272 + $0x90] sm:$0xff] %v1324
        %1377 = vst [vmem:[%s272 + $0x98] sm:$0xff] %v1326
        %1378 = vst [vmem:[%s272 + $0xa0] sm:$0xff] %v1330
        %1379 = vst [vmem:[%s272 + $0xa8] sm:$0xff] %v1332
        %1380 = vst [vmem:[%s272 + $0xb0] sm:$0xff] %v1334
        %1381 = vst [vmem:[%s272 + $0xb8] sm:$0xff] %v1336
        %1382 = vst [vmem:[%s272 + $0xc0] sm:$0xff] %v1340
        %1383 = vst [vmem:[%s272 + $0xc8] sm:$0xff] %v1342
        %1384 = vst [vmem:[%s272 + $0xd0] sm:$0xff] %v1344
        %1385 = vst [vmem:[%s272 + $0xd8] sm:$0xff] %v1346
        %1386 = vst [vmem:[%s272 + $0xe0] sm:$0xff] %v1350
        %1387 = vst [vmem:[%s272 + $0xe8] sm:$0xff] %v1352
        %1388 = vst [vmem:[%s272 + $0xf0] sm:$0xff] %v1354
        %1389 = vst [vmem:[%s272 + $0xf8] sm:$0xff] %v1356
        %s1390 = sand.u32 %s141, 1
        %s1391 = scalar_lea.sflag [#allocation4], %s1390
        %s1392 = sand.u32 %s141, 1
        %s1393 = smul.addr %s1392, 256
        %s1394 = scalar_lea.vmem [#allocation8], %s1393
        // Predicated region
        $region53: #{autoencoder_forward.1} parent=39 // pred_check
          %p1395 = pneg %p151
        $region54: #{autoencoder_forward.1} parent=39 // pred_check_branch
          %1397 = sbr.rel (%p1395) target = $region56
        $region55: #{autoencoder_forward.1} parent=39 // pred_region
          %s1398 = smul.u32 16, %s23
          %s1400 = ssub.s32 4096, 4096
          %1401 = vsyncadd %s1391, %s1400
          %s1402 = smul.addr %s1398, 2
          %s1403 = smul.addr %s1402, 128
          %s1404 = scalar_lea.hbm %s5, %s1403
          %s1405 = sshll.u32 %s1394, 4
          %s1406 = int_to_ptr.vmem [resolvable:$true] %s1405
          %1411 = dma.vmem_to_hbm [thread:$0]  %s1406, 4096, %s1404, %s1391, 256, 256, 16
        $region56: #{autoencoder_forward.1} parent=39 // pred_fallthru
          _
      $region40: #{autoencoder_forward.1} parent=5 // pred_fallthru
        _
      %p1412 = scmp.le.s32.totalorder 2, %s18
      // Predicated region
      $region57: #{autoencoder_forward.1} parent=5 // pred_check
        %p1413 = pneg %p1412
      $region58: #{autoencoder_forward.1} parent=5 // pred_check_branch
        %1415 = sbr.rel (%p1413) target = $region60
      $region59: #{autoencoder_forward.1} parent=5 // pred_region
        %s1416 = ssub.s32 %s18, 2
        // Predicated region
        $region61: #{autoencoder_forward.1} parent=59 // pred_check
          %p1417 = pneg %p157
        $region62: #{autoencoder_forward.1} parent=59 // pred_check_branch
          %1419 = sbr.rel (%p1417) target = $region64
        $region63: #{autoencoder_forward.1} parent=59 // pred_region
          %s1420 = sand.u32 %s142, 1
          %s1421 = scalar_lea.sflag [#allocation4], %s1420
          %s1422 = sand.u32 %s142, 1
          %s1423 = smul.addr %s1422, 256
          %s1424 = scalar_lea.vmem [#allocation8], %s1423
          %1425 = dma.done %s1421, 4096
        $region64: #{autoencoder_forward.1} parent=59 // pred_fallthru
          _
      $region60: #{autoencoder_forward.1} parent=5 // pred_fallthru
        _
    $region6: #{autoencoder_forward.1} parent=1 // loop_footer
      %s22 = sadd.s32 1, %s18
    $region7: #{autoencoder_forward.1} parent=1 // loop_footer_branch
      %17 = sbr.rel target = $region3
    $region8: #{autoencoder_forward.1} parent=1 // loop_exit
      _
    %1426 = vsyncpa [#allocation3], 1
    %s1427 = scalar_lea.sflag [#allocation3], 1
    %1428 = vsyncpa %s1427, 1
    %1429 = vsyncpa [#allocation6], 1
    %1430 = vsyncpa [#allocation4], 1
    %s1431 = scalar_lea.sflag [#allocation4], 1
    %1432 = vsyncpa %s1431, 1

</llo_original>
